<compile_context>
chip_gen: v6e
topology: v6e:2x2x1
jax: 0.10.0
libtpu: 0.0.40
codegen_flags: <defaults>
</compile_context>

<pallas_src>
import jax
import jax.numpy as jnp
from jax.experimental import pallas as pl
from jax.experimental.pallas import tpu as pltpu

FEAT = 1024      # dinov2_vitl14 embedding dim
HIDDEN = 64
OUT = 1


def bce_head_kernel(f1_ref, f2_ref, w1_ref, b1_ref, w2r_ref, b2_ref, o_ref):
    # Cast feature tiles to bf16 on the VPU (hidden under the feature DMA) so
    # the MXU runs its fast bf16 path with f32 accumulation.
    f1 = f1_ref[...].astype(jnp.bfloat16)
    f2 = f2_ref[...].astype(jnp.bfloat16)
    # fc1 over concat(f1, f2): cat(f1,f2) @ W1 == f1 @ W1[:FEAT] + f2 @ W1[FEAT:].
    # Static slices of the single resident w1 tile are sublane-aligned views.
    h = jnp.dot(f1, w1_ref[0:FEAT, :], preferred_element_type=jnp.float32)
    h = h + jnp.dot(f2, w1_ref[FEAT:2 * FEAT, :],
                    preferred_element_type=jnp.float32)
    h = jnp.maximum(h + b1_ref[...], 0.0)                 # bias + ReLU, f32 on VPU
    # fc2 (out_features = 1): VPU multiply + XLU lane reduction instead of an
    # N=1 MXU matmul (which would waste a whole MXU column and a second drain).
    logit = jnp.sum(h * w2r_ref[...], axis=-1, keepdims=True) + b2_ref[...]
    o_ref[...] = jax.nn.sigmoid(logit)                    # (TB, 1)


def _default_batch_tile():
    """Batch tile: 256 on v5e and older (16 MiB scoped VMEM), 512 on v6e/v7x."""
    try:
        kind = jax.devices()[0].device_kind.lower()
    except Exception:
        return 256
    return 512 if ("v6" in kind or "v7" in kind) else 256


def bce_model_head(feat1, feat2, w1, b1, w2, b2, *, batch_tile=None):
    """feat1, feat2: (B, 1024).  w1: (2048, 64), b1: (64,), w2: (64, 1), b2: (1,)."""
    B = feat1.shape[0]
    if batch_tile is None:
        batch_tile = _default_batch_tile()

    # Batch tiling: single full-size block for small B, otherwise fixed tiles
    # with zero-padding up to a multiple of the tile.
    tb = B if B <= batch_tile else batch_tile
    padded_b = pl.cdiv(B, tb) * tb
    if padded_b != B:
        pad = padded_b - B
        feat1 = jnp.pad(feat1, ((0, pad), (0, 0)))
        feat2 = jnp.pad(feat2, ((0, pad), (0, 0)))

    # Features stay f32 in HBM (cast to bf16 inside the kernel); only the tiny,
    # VMEM-resident fc1 weight is pre-cast to bf16.
    f1 = feat1.astype(jnp.float32)
    f2 = feat2.astype(jnp.float32)
    w1_bf = w1.astype(jnp.bfloat16)                       # (2048, 64), passed whole
    b1_2d = b1.reshape(1, HIDDEN).astype(jnp.float32)
    w2_row = w2.reshape(1, HIDDEN).astype(jnp.float32)    # (64,1) -> (1,64) row
    b2_2d = b2.reshape(1, OUT).astype(jnp.float32)

    grid = (padded_b // tb,)
    cost = pl.CostEstimate(
        flops=2 * padded_b * (2 * FEAT) * HIDDEN + 2 * padded_b * HIDDEN,
        transcendentals=padded_b,
        bytes_accessed=(2 * padded_b * FEAT * 4           # f32 feature tiles
                        + 2 * FEAT * HIDDEN * 2           # bf16 fc1 weights
                        + (2 * HIDDEN + OUT) * 4          # biases + w2 row
                        + padded_b * OUT * 4))            # output

    out = pl.pallas_call(
        bce_head_kernel,
        out_shape=jax.ShapeDtypeStruct((padded_b, OUT), jnp.float32),
        grid_spec=pltpu.PrefetchScalarGridSpec(
            num_scalar_prefetch=0,
            grid=grid,
            in_specs=[
                pl.BlockSpec((tb, FEAT), lambda i: (i, 0)),          # feat1 tile
                pl.BlockSpec((tb, FEAT), lambda i: (i, 0)),          # feat2 tile
                pl.BlockSpec((2 * FEAT, HIDDEN), lambda i: (0, 0)),  # w1 (resident)
                pl.BlockSpec((1, HIDDEN), lambda i: (0, 0)),         # b1 (resident)
                pl.BlockSpec((1, HIDDEN), lambda i: (0, 0)),         # w2 row (resident)
                pl.BlockSpec((1, OUT), lambda i: (0, 0)),            # b2 (resident)
            ],
            out_specs=pl.BlockSpec((tb, OUT), lambda i: (i, 0)),
        ),
        compiler_params=pltpu.CompilerParams(
            dimension_semantics=("parallel",)),           # megacore split on v7x
        cost_estimate=cost,
    )(f1, f2, w1_bf, b1_2d, w2_row, b2_2d)

    return out[:B] if padded_b != B else out


def _torch_linear_init(key, in_features, out_features):
    """Deterministic init matching nn.Linear defaults: U(-1/sqrt(in), 1/sqrt(in))."""
    kw, kb = jax.random.split(key)
    bound = 1.0 / jnp.sqrt(jnp.float32(in_features))
    # stored as (in, out); PyTorch stores (out, in) and transposes in forward.
    w = jax.random.uniform(kw, (in_features, out_features), jnp.float32, -bound, bound)
    b = jax.random.uniform(kb, (out_features,), jnp.float32, -bound, bound)
    return w, b


if __name__ == "__main__":
    key = jax.random.PRNGKey(0)
    k_f1, k_f2, k_fc1, k_fc2 = jax.random.split(key, 4)

    B = 8
    # Backbone outputs (dinov2_vitl14 features), synthesized deterministically.
    feat1 = jax.random.normal(k_f1, (B, FEAT), jnp.float32)
    feat2 = jax.random.normal(k_f2, (B, FEAT), jnp.float32)

    w1, b1 = _torch_linear_init(k_fc1, 2 * FEAT, HIDDEN)   # fc1: Linear(2048, 64)
    w2, b2 = _torch_linear_init(k_fc2, HIDDEN, OUT)        # fc2: Linear(64, 1)

    out = bce_model_head(feat1, feat2, w1, b1, w2, b2)
    out = jax.block_until_ready(out)

    # Reference check in plain JAX (same math as the PyTorch head), f32 throughout.
    cat = jnp.concatenate([feat1, feat2], axis=1)
    ref = jax.nn.sigmoid(jnp.maximum(cat @ w1 + b1, 0.0) @ w2 + b2)
    assert out.shape == (B, OUT)
    # bf16 MXU inputs with f32 accumulation: tolerance relaxed vs pure-f32 path.
    assert jnp.allclose(out, ref, atol=2e-2, rtol=2e-2)

    print("KERNEL_OK")
</pallas_src>

<mosaic_0001>
module attributes {stable_mosaic.version = 11 : i64} {
  func.func @bce_head_kernel(%arg0: i32, %arg1: memref<8x1024xf32, #tpu.memory_space<vmem>>, %arg2: memref<8x1024xf32, #tpu.memory_space<vmem>>, %arg3: memref<2048x64xbf16, #tpu.memory_space<vmem>>, %arg4: memref<1x64xf32, #tpu.memory_space<vmem>>, %arg5: memref<1x64xf32, #tpu.memory_space<vmem>>, %arg6: memref<1x1xf32, #tpu.memory_space<vmem>>, %arg7: memref<8x1xf32, #tpu.memory_space<vmem>>) attributes {dimension_semantics = [#tpu.dimension_semantics<parallel>], iteration_bounds = array<i64: 1>, scalar_prefetch = 0 : i64, scratch_operands = 0 : i64, tpu.core_type = #tpu.core_type<tc>, window_params = [{transform_indices = @transform_0, window_bounds = array<i64: 8, 1024>}, {transform_indices = @transform_1, window_bounds = array<i64: 8, 1024>}, {pipeline_mode = #tpu.pipeline_mode<synchronous>, transform_indices = @transform_2, window_bounds = array<i64: 2048, 64>}, {pipeline_mode = #tpu.pipeline_mode<synchronous>, transform_indices = @transform_3, window_bounds = array<i64: 1, 64>}, {pipeline_mode = #tpu.pipeline_mode<synchronous>, transform_indices = @transform_4, window_bounds = array<i64: 1, 64>}, {pipeline_mode = #tpu.pipeline_mode<synchronous>, transform_indices = @transform_5, window_bounds = array<i64: 1, 1>}, {transform_indices = @transform_6, window_bounds = array<i64: 8, 1>}]} {
    %c0 = arith.constant 0 : index
    %c0_0 = arith.constant 0 : index
    %0 = vector.load %arg1[%c0, %c0_0] : memref<8x1024xf32, #tpu.memory_space<vmem>>, vector<8x1024xf32>
    %1 = arith.truncf %0 : vector<8x1024xf32> to vector<8x1024xbf16>
    %c0_1 = arith.constant 0 : index
    %c0_2 = arith.constant 0 : index
    %2 = vector.load %arg2[%c0_1, %c0_2] : memref<8x1024xf32, #tpu.memory_space<vmem>>, vector<8x1024xf32>
    %3 = arith.truncf %2 : vector<8x1024xf32> to vector<8x1024xbf16>
    %c0_3 = arith.constant 0 : index
    %c0_4 = arith.constant 0 : index
    %4 = vector.load %arg3[%c0_3, %c0_4] : memref<2048x64xbf16, #tpu.memory_space<vmem>>, vector<1024x64xbf16>
    %cst = arith.constant dense<0.000000e+00> : vector<8x64xf32>
    %5 = tpu.matmul %1, %4, %cst {dimension_numbers = #tpu.dot_dimension_numbers<[1], [0], [0], [1], [0, 0, 1, 1], [], []>} : vector<8x1024xbf16>, vector<1024x64xbf16>, vector<8x64xf32> -> vector<8x64xf32>
    %c1024 = arith.constant 1024 : index
    %c0_5 = arith.constant 0 : index
    %6 = vector.load %arg3[%c1024, %c0_5] : memref<2048x64xbf16, #tpu.memory_space<vmem>>, vector<1024x64xbf16>
    %cst_6 = arith.constant dense<0.000000e+00> : vector<8x64xf32>
    %7 = tpu.matmul %3, %6, %cst_6 {dimension_numbers = #tpu.dot_dimension_numbers<[1], [0], [0], [1], [0, 0, 1, 1], [], []>} : vector<8x1024xbf16>, vector<1024x64xbf16>, vector<8x64xf32> -> vector<8x64xf32>
    %8 = arith.addf %5, %7 : vector<8x64xf32>
    %c0_7 = arith.constant 0 : index
    %c0_8 = arith.constant 0 : index
    %9 = vector.load %arg4[%c0_7, %c0_8] : memref<1x64xf32, #tpu.memory_space<vmem>>, vector<1x64xf32>
    %10 = vector.broadcast %9 : vector<1x64xf32> to vector<8x64xf32>
    %11 = arith.addf %8, %10 : vector<8x64xf32>
    %cst_9 = arith.constant 0.000000e+00 : f32
    %12 = vector.broadcast %cst_9 : f32 to vector<8x64xf32>
    %13 = arith.maximumf %11, %12 : vector<8x64xf32>
    %c0_10 = arith.constant 0 : index
    %c0_11 = arith.constant 0 : index
    %14 = vector.load %arg5[%c0_10, %c0_11] : memref<1x64xf32, #tpu.memory_space<vmem>>, vector<1x64xf32>
    %15 = vector.broadcast %14 : vector<1x64xf32> to vector<8x64xf32>
    %16 = arith.mulf %13, %15 : vector<8x64xf32>
    %cst_12 = arith.constant dense<0.000000e+00> : vector<8xf32>
    %17 = vector.multi_reduction <add>, %16, %cst_12 [1] : vector<8x64xf32> to vector<8xf32>
    %18 = vector.shape_cast %17 : vector<8xf32> to vector<8x1xf32>
    %c0_13 = arith.constant 0 : index
    %c0_14 = arith.constant 0 : index
    %19 = vector.load %arg6[%c0_13, %c0_14] : memref<1x1xf32, #tpu.memory_space<vmem>>, vector<1x1xf32>
    %20 = vector.broadcast %19 : vector<1x1xf32> to vector<8x1xf32>
    %21 = arith.addf %18, %20 : vector<8x1xf32>
    %22 = arith.negf %21 : vector<8x1xf32>
    %23 = math.exp %22 : vector<8x1xf32>
    %cst_15 = arith.constant 1.000000e+00 : f32
    %24 = vector.broadcast %cst_15 : f32 to vector<8x1xf32>
    %25 = arith.addf %24, %23 : vector<8x1xf32>
    %26 = arith.divf %24, %25 : vector<8x1xf32>
    %c0_16 = arith.constant 0 : index
    %c0_17 = arith.constant 0 : index
    %27 = vector.load %arg7[%c0_16, %c0_17] : memref<8x1xf32, #tpu.memory_space<vmem>>, vector<8x1xf32>
    tpu.vector_store %arg7[%c0_16, %c0_17], %26 {strides = array<i32>} : memref<8x1xf32, #tpu.memory_space<vmem>>, vector<8x1xf32>,
    return
  }
  func.func @transform_0(%arg0: i32) -> (i32, i32) {
    %c0_i32 = arith.constant 0 : i32
    %c0_i32_0 = arith.constant 0 : i32
    return %arg0, %c0_i32 : i32, i32
  }
  func.func @transform_1(%arg0: i32) -> (i32, i32) {
    %c0_i32 = arith.constant 0 : i32
    %c0_i32_0 = arith.constant 0 : i32
    return %arg0, %c0_i32 : i32, i32
  }
  func.func @transform_2(%arg0: i32) -> (i32, i32) {
    %c0_i32 = arith.constant 0 : i32
    %c0_i32_0 = arith.constant 0 : i32
    %c0_i32_1 = arith.constant 0 : i32
    return %c0_i32, %c0_i32_0 : i32, i32
  }
  func.func @transform_3(%arg0: i32) -> (i32, i32) {
    %c0_i32 = arith.constant 0 : i32
    %c0_i32_0 = arith.constant 0 : i32
    %c0_i32_1 = arith.constant 0 : i32
    return %c0_i32, %c0_i32_0 : i32, i32
  }
  func.func @transform_4(%arg0: i32) -> (i32, i32) {
    %c0_i32 = arith.constant 0 : i32
    %c0_i32_0 = arith.constant 0 : i32
    %c0_i32_1 = arith.constant 0 : i32
    return %c0_i32, %c0_i32_0 : i32, i32
  }
  func.func @transform_5(%arg0: i32) -> (i32, i32) {
    %c0_i32 = arith.constant 0 : i32
    %c0_i32_0 = arith.constant 0 : i32
    %c0_i32_1 = arith.constant 0 : i32
    return %c0_i32, %c0_i32_0 : i32, i32
  }
  func.func @transform_6(%arg0: i32) -> (i32, i32) {
    %c0_i32 = arith.constant 0 : i32
    %c0_i32_0 = arith.constant 0 : i32
    return %arg0, %c0_i32 : i32, i32
  }
}

</mosaic_0001>

<llo_original>
// kernel: tpu_custom_call.1
$region0: #{tpu_custom_call.1}
  #allocation0 [shape = 'u32[]', space=smem, size = 0x4, offset = 0x4, fixed_abs, tag = 'smem constant byte address 0x4 - core index']
  #allocation1 [shape = 'u32[144,128]{1,0:T(1,128)}', space=vmem, size = 0x12000, scoped, tag = 'internal scratch']
  #allocation2 [shape = 'f32[1,1]{1,0:T(1,128)S(1)}', space=vmem, size = 0x200, scoped, tag = 'scoped memory for tpu_custom_call.1']
  %s0 = inlined_call_operand.vmem [shape: f32[8,1024], index: 0, kind: input, shape index: {}]
  %s1 = inlined_call_operand.vmem [shape: f32[8,1024], index: 1, kind: input, shape index: {}]
  %s2 = inlined_call_operand.vmem [shape: bf16[2048,64], index: 2, kind: input, shape index: {}]
  %s3 = inlined_call_operand.vmem [shape: f32[1,64], index: 3, kind: input, shape index: {}]
  %s4 = inlined_call_operand.vmem [shape: f32[1,64], index: 4, kind: input, shape index: {}]
  %s5 = inlined_call_operand.<no memory space> [shape: f32[1,1], index: 5, kind: input, shape index: {}]
  %s6 = inlined_call_operand.vmem [shape: f32[8,1], index: 6, kind: output, shape index: {}]
  %s7 = sld [smem:[#allocation0]]
  $region34: #{tpu_custom_call.1} parent=0
    _
  %s9 = ssub.s32 1, %s7
  %s10 = scalar_select 0, %s9, %s7
  %v11 = vstv %s5
  %12 = vst [vmem:[#allocation2] sm:$0x1] %v11
  // Predicated region
  $region2: #{tpu_custom_call.1} parent=0 // pred_check
    _
  $region3: #{tpu_custom_call.1} parent=0 // pred_check_branch
    %14 = sbr.rel (0) target = $region5
  $region4: #{tpu_custom_call.1} parent=0 // pred_region
    _
  $region5: #{tpu_custom_call.1} parent=0 // pred_fallthru
    _
  // Predicated region
  $region6: #{tpu_custom_call.1} parent=0 // pred_check
    _
  $region7: #{tpu_custom_call.1} parent=0 // pred_check_branch
    %16 = sbr.rel (0) target = $region9
  $region8: #{tpu_custom_call.1} parent=0 // pred_region
    _
  $region9: #{tpu_custom_call.1} parent=0 // pred_fallthru
    _
  // Predicated region
  $region10: #{tpu_custom_call.1} parent=0 // pred_check
    _
  $region11: #{tpu_custom_call.1} parent=0 // pred_check_branch
    %18 = sbr.rel (0) target = $region13
  $region12: #{tpu_custom_call.1} parent=0 // pred_region
    _
  $region13: #{tpu_custom_call.1} parent=0 // pred_fallthru
    _
  // Predicated region
  $region14: #{tpu_custom_call.1} parent=0 // pred_check
    _
  $region15: #{tpu_custom_call.1} parent=0 // pred_check_branch
    %20 = sbr.rel (0) target = $region17
  $region16: #{tpu_custom_call.1} parent=0 // pred_region
    _
  $region17: #{tpu_custom_call.1} parent=0 // pred_fallthru
    _
  // Predicated region
  $region18: #{tpu_custom_call.1} parent=0 // pred_check
    _
  $region19: #{tpu_custom_call.1} parent=0 // pred_check_branch
    %22 = sbr.rel (0) target = $region21
  $region20: #{tpu_custom_call.1} parent=0 // pred_region
    _
  $region21: #{tpu_custom_call.1} parent=0 // pred_fallthru
    _
  // Predicated region
  $region22: #{tpu_custom_call.1} parent=0 // pred_check
    _
  $region23: #{tpu_custom_call.1} parent=0 // pred_check_branch
    %24 = sbr.rel (0) target = $region25
  $region24: #{tpu_custom_call.1} parent=0 // pred_region
    _
  $region25: #{tpu_custom_call.1} parent=0 // pred_fallthru
    _
  %v26 = vld [vmem:[%s0] sm:$0xff]
  %v27 = vld [vmem:[%s0 + $0x8] sm:$0xff]
  %v28 = vld [vmem:[%s0 + $0x10] sm:$0xff]
  %v29 = vld [vmem:[%s0 + $0x18] sm:$0xff]
  %v30 = vld [vmem:[%s0 + $0x20] sm:$0xff]
  %v31 = vld [vmem:[%s0 + $0x28] sm:$0xff]
  %v32 = vld [vmem:[%s0 + $0x30] sm:$0xff]
  %v33 = vld [vmem:[%s0 + $0x38] sm:$0xff]
  %v34 = vpack.c.bf16 %v26, %v26
  %v35 = vpack.c.bf16 %v27, %v27
  %v36 = vpack.c.bf16 %v28, %v28
  %v37 = vpack.c.bf16 %v29, %v29
  %v38 = vpack.c.bf16 %v30, %v30
  %v39 = vpack.c.bf16 %v31, %v31
  %v40 = vpack.c.bf16 %v32, %v32
  %v41 = vpack.c.bf16 %v33, %v33
  %v42 = vld [vmem:[%s1] sm:$0xff]
  %v43 = vld [vmem:[%s1 + $0x8] sm:$0xff]
  %v44 = vld [vmem:[%s1 + $0x10] sm:$0xff]
  %v45 = vld [vmem:[%s1 + $0x18] sm:$0xff]
  %v46 = vld [vmem:[%s1 + $0x20] sm:$0xff]
  %v47 = vld [vmem:[%s1 + $0x28] sm:$0xff]
  %v48 = vld [vmem:[%s1 + $0x30] sm:$0xff]
  %v49 = vld [vmem:[%s1 + $0x38] sm:$0xff]
  %v50 = vpack.c.bf16 %v42, %v42
  %v51 = vpack.c.bf16 %v43, %v43
  %v52 = vpack.c.bf16 %v44, %v44
  %v53 = vpack.c.bf16 %v45, %v45
  %v54 = vpack.c.bf16 %v46, %v46
  %v55 = vpack.c.bf16 %v47, %v47
  %v56 = vpack.c.bf16 %v48, %v48
  %v57 = vpack.c.bf16 %v49, %v49
  %v58 = vld [vmem:[%s2] sm:$0xf]
  %v59 = vld [vmem:[%s2 + $0x4] sm:$0xf]
  %v60 = vld [vmem:[%s2 + $0x8] sm:$0xf]
  %v61 = vld [vmem:[%s2 + $0xc] sm:$0xf]
  %v62 = vld [vmem:[%s2 + $0x10] sm:$0xf]
  %v63 = vld [vmem:[%s2 + $0x14] sm:$0xf]
  %v64 = vld [vmem:[%s2 + $0x18] sm:$0xf]
  %v65 = vld [vmem:[%s2 + $0x1c] sm:$0xf]
  %v66 = vld [vmem:[%s2 + $0x20] sm:$0xf]
  %v67 = vld [vmem:[%s2 + $0x24] sm:$0xf]
  %v68 = vld [vmem:[%s2 + $0x28] sm:$0xf]
  %v69 = vld [vmem:[%s2 + $0x2c] sm:$0xf]
  %v70 = vld [vmem:[%s2 + $0x30] sm:$0xf]
  %v71 = vld [vmem:[%s2 + $0x34] sm:$0xf]
  %v72 = vld [vmem:[%s2 + $0x38] sm:$0xf]
  %v73 = vld [vmem:[%s2 + $0x3c] sm:$0xf]
  %v74 = vld [vmem:[%s2 + $0x40] sm:$0xf]
  %v75 = vld [vmem:[%s2 + $0x44] sm:$0xf]
  %v76 = vld [vmem:[%s2 + $0x48] sm:$0xf]
  %v77 = vld [vmem:[%s2 + $0x4c] sm:$0xf]
  %v78 = vld [vmem:[%s2 + $0x50] sm:$0xf]
  %v79 = vld [vmem:[%s2 + $0x54] sm:$0xf]
  %v80 = vld [vmem:[%s2 + $0x58] sm:$0xf]
  %v81 = vld [vmem:[%s2 + $0x5c] sm:$0xf]
  %v82 = vld [vmem:[%s2 + $0x60] sm:$0xf]
  %v83 = vld [vmem:[%s2 + $0x64] sm:$0xf]
  %v84 = vld [vmem:[%s2 + $0x68] sm:$0xf]
  %v85 = vld [vmem:[%s2 + $0x6c] sm:$0xf]
  %v86 = vld [vmem:[%s2 + $0x70] sm:$0xf]
  %v87 = vld [vmem:[%s2 + $0x74] sm:$0xf]
  %v88 = vld [vmem:[%s2 + $0x78] sm:$0xf]
  %v89 = vld [vmem:[%s2 + $0x7c] sm:$0xf]
  %v90 = vld [vmem:[%s2 + $0x80] sm:$0xf]
  %v91 = vld [vmem:[%s2 + $0x84] sm:$0xf]
  %v92 = vld [vmem:[%s2 + $0x88] sm:$0xf]
  %v93 = vld [vmem:[%s2 + $0x8c] sm:$0xf]
  %v94 = vld [vmem:[%s2 + $0x90] sm:$0xf]
  %v95 = vld [vmem:[%s2 + $0x94] sm:$0xf]
  %v96 = vld [vmem:[%s2 + $0x98] sm:$0xf]
  %v97 = vld [vmem:[%s2 + $0x9c] sm:$0xf]
  %v98 = vld [vmem:[%s2 + $0xa0] sm:$0xf]
  %v99 = vld [vmem:[%s2 + $0xa4] sm:$0xf]
  %v100 = vld [vmem:[%s2 + $0xa8] sm:$0xf]
  %v101 = vld [vmem:[%s2 + $0xac] sm:$0xf]
  %v102 = vld [vmem:[%s2 + $0xb0] sm:$0xf]
  %v103 = vld [vmem:[%s2 + $0xb4] sm:$0xf]
  %v104 = vld [vmem:[%s2 + $0xb8] sm:$0xf]
  %v105 = vld [vmem:[%s2 + $0xbc] sm:$0xf]
  %v106 = vld [vmem:[%s2 + $0xc0] sm:$0xf]
  %v107 = vld [vmem:[%s2 + $0xc4] sm:$0xf]
  %v108 = vld [vmem:[%s2 + $0xc8] sm:$0xf]
  %v109 = vld [vmem:[%s2 + $0xcc] sm:$0xf]
  %v110 = vld [vmem:[%s2 + $0xd0] sm:$0xf]
  %v111 = vld [vmem:[%s2 + $0xd4] sm:$0xf]
  %v112 = vld [vmem:[%s2 + $0xd8] sm:$0xf]
  %v113 = vld [vmem:[%s2 + $0xdc] sm:$0xf]
  %v114 = vld [vmem:[%s2 + $0xe0] sm:$0xf]
  %v115 = vld [vmem:[%s2 + $0xe4] sm:$0xf]
  %v116 = vld [vmem:[%s2 + $0xe8] sm:$0xf]
  %v117 = vld [vmem:[%s2 + $0xec] sm:$0xf]
  %v118 = vld [vmem:[%s2 + $0xf0] sm:$0xf]
  %v119 = vld [vmem:[%s2 + $0xf4] sm:$0xf]
  %v120 = vld [vmem:[%s2 + $0xf8] sm:$0xf]
  %v121 = vld [vmem:[%s2 + $0xfc] sm:$0xf]
  %v122 = vld [vmem:[%s2 + $0x100] sm:$0xf]
  %v123 = vld [vmem:[%s2 + $0x104] sm:$0xf]
  %v124 = vld [vmem:[%s2 + $0x108] sm:$0xf]
  %v125 = vld [vmem:[%s2 + $0x10c] sm:$0xf]
  %v126 = vld [vmem:[%s2 + $0x110] sm:$0xf]
  %v127 = vld [vmem:[%s2 + $0x114] sm:$0xf]
  %v128 = vld [vmem:[%s2 + $0x118] sm:$0xf]
  %v129 = vld [vmem:[%s2 + $0x11c] sm:$0xf]
  %v130 = vld [vmem:[%s2 + $0x120] sm:$0xf]
  %v131 = vld [vmem:[%s2 + $0x124] sm:$0xf]
  %v132 = vld [vmem:[%s2 + $0x128] sm:$0xf]
  %v133 = vld [vmem:[%s2 + $0x12c] sm:$0xf]
  %v134 = vld [vmem:[%s2 + $0x130] sm:$0xf]
  %v135 = vld [vmem:[%s2 + $0x134] sm:$0xf]
  %v136 = vld [vmem:[%s2 + $0x138] sm:$0xf]
  %v137 = vld [vmem:[%s2 + $0x13c] sm:$0xf]
  %v138 = vld [vmem:[%s2 + $0x140] sm:$0xf]
  %v139 = vld [vmem:[%s2 + $0x144] sm:$0xf]
  %v140 = vld [vmem:[%s2 + $0x148] sm:$0xf]
  %v141 = vld [vmem:[%s2 + $0x14c] sm:$0xf]
  %v142 = vld [vmem:[%s2 + $0x150] sm:$0xf]
  %v143 = vld [vmem:[%s2 + $0x154] sm:$0xf]
  %v144 = vld [vmem:[%s2 + $0x158] sm:$0xf]
  %v145 = vld [vmem:[%s2 + $0x15c] sm:$0xf]
  %v146 = vld [vmem:[%s2 + $0x160] sm:$0xf]
  %v147 = vld [vmem:[%s2 + $0x164] sm:$0xf]
  %v148 = vld [vmem:[%s2 + $0x168] sm:$0xf]
  %v149 = vld [vmem:[%s2 + $0x16c] sm:$0xf]
  %v150 = vld [vmem:[%s2 + $0x170] sm:$0xf]
  %v151 = vld [vmem:[%s2 + $0x174] sm:$0xf]
  %v152 = vld [vmem:[%s2 + $0x178] sm:$0xf]
  %v153 = vld [vmem:[%s2 + $0x17c] sm:$0xf]
  %v154 = vld [vmem:[%s2 + $0x180] sm:$0xf]
  %v155 = vld [vmem:[%s2 + $0x184] sm:$0xf]
  %v156 = vld [vmem:[%s2 + $0x188] sm:$0xf]
  %v157 = vld [vmem:[%s2 + $0x18c] sm:$0xf]
  %v158 = vld [vmem:[%s2 + $0x190] sm:$0xf]
  %v159 = vld [vmem:[%s2 + $0x194] sm:$0xf]
  %v160 = vld [vmem:[%s2 + $0x198] sm:$0xf]
  %v161 = vld [vmem:[%s2 + $0x19c] sm:$0xf]
  %v162 = vld [vmem:[%s2 + $0x1a0] sm:$0xf]
  %v163 = vld [vmem:[%s2 + $0x1a4] sm:$0xf]
  %v164 = vld [vmem:[%s2 + $0x1a8] sm:$0xf]
  %v165 = vld [vmem:[%s2 + $0x1ac] sm:$0xf]
  %v166 = vld [vmem:[%s2 + $0x1b0] sm:$0xf]
  %v167 = vld [vmem:[%s2 + $0x1b4] sm:$0xf]
  %v168 = vld [vmem:[%s2 + $0x1b8] sm:$0xf]
  %v169 = vld [vmem:[%s2 + $0x1bc] sm:$0xf]
  %v170 = vld [vmem:[%s2 + $0x1c0] sm:$0xf]
  %v171 = vld [vmem:[%s2 + $0x1c4] sm:$0xf]
  %v172 = vld [vmem:[%s2 + $0x1c8] sm:$0xf]
  %v173 = vld [vmem:[%s2 + $0x1cc] sm:$0xf]
  %v174 = vld [vmem:[%s2 + $0x1d0] sm:$0xf]
  %v175 = vld [vmem:[%s2 + $0x1d4] sm:$0xf]
  %v176 = vld [vmem:[%s2 + $0x1d8] sm:$0xf]
  %v177 = vld [vmem:[%s2 + $0x1dc] sm:$0xf]
  %v178 = vld [vmem:[%s2 + $0x1e0] sm:$0xf]
  %v179 = vld [vmem:[%s2 + $0x1e4] sm:$0xf]
  %v180 = vld [vmem:[%s2 + $0x1e8] sm:$0xf]
  %v181 = vld [vmem:[%s2 + $0x1ec] sm:$0xf]
  %v182 = vld [vmem:[%s2 + $0x1f0] sm:$0xf]
  %v183 = vld [vmem:[%s2 + $0x1f4] sm:$0xf]
  %v184 = vld [vmem:[%s2 + $0x1f8] sm:$0xf]
  %v185 = vld [vmem:[%s2 + $0x1fc] sm:$0xf]
  %v186 = vld [vmem:[%s2 + $0x200] sm:$0xf]
  %v187 = vld [vmem:[%s2 + $0x204] sm:$0xf]
  %v188 = vld [vmem:[%s2 + $0x208] sm:$0xf]
  %v189 = vld [vmem:[%s2 + $0x20c] sm:$0xf]
  %v190 = vld [vmem:[%s2 + $0x210] sm:$0xf]
  %v191 = vld [vmem:[%s2 + $0x214] sm:$0xf]
  %v192 = vld [vmem:[%s2 + $0x218] sm:$0xf]
  %v193 = vld [vmem:[%s2 + $0x21c] sm:$0xf]
  %v194 = vld [vmem:[%s2 + $0x220] sm:$0xf]
  %v195 = vld [vmem:[%s2 + $0x224] sm:$0xf]
  %v196 = vld [vmem:[%s2 + $0x228] sm:$0xf]
  %v197 = vld [vmem:[%s2 + $0x22c] sm:$0xf]
  %v198 = vld [vmem:[%s2 + $0x230] sm:$0xf]
  %v199 = vld [vmem:[%s2 + $0x234] sm:$0xf]
  %v200 = vld [vmem:[%s2 + $0x238] sm:$0xf]
  %v201 = vld [vmem:[%s2 + $0x23c] sm:$0xf]
  %v202 = vld [vmem:[%s2 + $0x240] sm:$0xf]
  %v203 = vld [vmem:[%s2 + $0x244] sm:$0xf]
  %v204 = vld [vmem:[%s2 + $0x248] sm:$0xf]
  %v205 = vld [vmem:[%s2 + $0x24c] sm:$0xf]
  %v206 = vld [vmem:[%s2 + $0x250] sm:$0xf]
  %v207 = vld [vmem:[%s2 + $0x254] sm:$0xf]
  %v208 = vld [vmem:[%s2 + $0x258] sm:$0xf]
  %v209 = vld [vmem:[%s2 + $0x25c] sm:$0xf]
  %v210 = vld [vmem:[%s2 + $0x260] sm:$0xf]
  %v211 = vld [vmem:[%s2 + $0x264] sm:$0xf]
  %v212 = vld [vmem:[%s2 + $0x268] sm:$0xf]
  %v213 = vld [vmem:[%s2 + $0x26c] sm:$0xf]
  %v214 = vld [vmem:[%s2 + $0x270] sm:$0xf]
  %v215 = vld [vmem:[%s2 + $0x274] sm:$0xf]
  %v216 = vld [vmem:[%s2 + $0x278] sm:$0xf]
  %v217 = vld [vmem:[%s2 + $0x27c] sm:$0xf]
  %v218 = vld [vmem:[%s2 + $0x280] sm:$0xf]
  %v219 = vld [vmem:[%s2 + $0x284] sm:$0xf]
  %v220 = vld [vmem:[%s2 + $0x288] sm:$0xf]
  %v221 = vld [vmem:[%s2 + $0x28c] sm:$0xf]
  %v222 = vld [vmem:[%s2 + $0x290] sm:$0xf]
  %v223 = vld [vmem:[%s2 + $0x294] sm:$0xf]
  %v224 = vld [vmem:[%s2 + $0x298] sm:$0xf]
  %v225 = vld [vmem:[%s2 + $0x29c] sm:$0xf]
  %v226 = vld [vmem:[%s2 + $0x2a0] sm:$0xf]
  %v227 = vld [vmem:[%s2 + $0x2a4] sm:$0xf]
  %v228 = vld [vmem:[%s2 + $0x2a8] sm:$0xf]
  %v229 = vld [vmem:[%s2 + $0x2ac] sm:$0xf]
  %v230 = vld [vmem:[%s2 + $0x2b0] sm:$0xf]
  %v231 = vld [vmem:[%s2 + $0x2b4] sm:$0xf]
  %v232 = vld [vmem:[%s2 + $0x2b8] sm:$0xf]
  %v233 = vld [vmem:[%s2 + $0x2bc] sm:$0xf]
  %v234 = vld [vmem:[%s2 + $0x2c0] sm:$0xf]
  %v235 = vld [vmem:[%s2 + $0x2c4] sm:$0xf]
  %v236 = vld [vmem:[%s2 + $0x2c8] sm:$0xf]
  %v237 = vld [vmem:[%s2 + $0x2cc] sm:$0xf]
  %v238 = vld [vmem:[%s2 + $0x2d0] sm:$0xf]
  %v239 = vld [vmem:[%s2 + $0x2d4] sm:$0xf]
  %v240 = vld [vmem:[%s2 + $0x2d8] sm:$0xf]
  %v241 = vld [vmem:[%s2 + $0x2dc] sm:$0xf]
  %v242 = vld [vmem:[%s2 + $0x2e0] sm:$0xf]
  %v243 = vld [vmem:[%s2 + $0x2e4] sm:$0xf]
  %v244 = vld [vmem:[%s2 + $0x2e8] sm:$0xf]
  %v245 = vld [vmem:[%s2 + $0x2ec] sm:$0xf]
  %v246 = vld [vmem:[%s2 + $0x2f0] sm:$0xf]
  %v247 = vld [vmem:[%s2 + $0x2f4] sm:$0xf]
  %v248 = vld [vmem:[%s2 + $0x2f8] sm:$0xf]
  %v249 = vld [vmem:[%s2 + $0x2fc] sm:$0xf]
  %v250 = vld [vmem:[%s2 + $0x300] sm:$0xf]
  %v251 = vld [vmem:[%s2 + $0x304] sm:$0xf]
  %v252 = vld [vmem:[%s2 + $0x308] sm:$0xf]
  %v253 = vld [vmem:[%s2 + $0x30c] sm:$0xf]
  %v254 = vld [vmem:[%s2 + $0x310] sm:$0xf]
  %v255 = vld [vmem:[%s2 + $0x314] sm:$0xf]
  %v256 = vld [vmem:[%s2 + $0x318] sm:$0xf]
  %v257 = vld [vmem:[%s2 + $0x31c] sm:$0xf]
  %v258 = vld [vmem:[%s2 + $0x320] sm:$0xf]
  %v259 = vld [vmem:[%s2 + $0x324] sm:$0xf]
  %v260 = vld [vmem:[%s2 + $0x328] sm:$0xf]
  %v261 = vld [vmem:[%s2 + $0x32c] sm:$0xf]
  %v262 = vld [vmem:[%s2 + $0x330] sm:$0xf]
  %v263 = vld [vmem:[%s2 + $0x334] sm:$0xf]
  %v264 = vld [vmem:[%s2 + $0x338] sm:$0xf]
  %v265 = vld [vmem:[%s2 + $0x33c] sm:$0xf]
  %v266 = vld [vmem:[%s2 + $0x340] sm:$0xf]
  %v267 = vld [vmem:[%s2 + $0x344] sm:$0xf]
  %v268 = vld [vmem:[%s2 + $0x348] sm:$0xf]
  %v269 = vld [vmem:[%s2 + $0x34c] sm:$0xf]
  %v270 = vld [vmem:[%s2 + $0x350] sm:$0xf]
  %v271 = vld [vmem:[%s2 + $0x354] sm:$0xf]
  %v272 = vld [vmem:[%s2 + $0x358] sm:$0xf]
  %v273 = vld [vmem:[%s2 + $0x35c] sm:$0xf]
  %v274 = vld [vmem:[%s2 + $0x360] sm:$0xf]
  %v275 = vld [vmem:[%s2 + $0x364] sm:$0xf]
  %v276 = vld [vmem:[%s2 + $0x368] sm:$0xf]
  %v277 = vld [vmem:[%s2 + $0x36c] sm:$0xf]
  %v278 = vld [vmem:[%s2 + $0x370] sm:$0xf]
  %v279 = vld [vmem:[%s2 + $0x374] sm:$0xf]
  %v280 = vld [vmem:[%s2 + $0x378] sm:$0xf]
  %v281 = vld [vmem:[%s2 + $0x37c] sm:$0xf]
  %v282 = vld [vmem:[%s2 + $0x380] sm:$0xf]
  %v283 = vld [vmem:[%s2 + $0x384] sm:$0xf]
  %v284 = vld [vmem:[%s2 + $0x388] sm:$0xf]
  %v285 = vld [vmem:[%s2 + $0x38c] sm:$0xf]
  %v286 = vld [vmem:[%s2 + $0x390] sm:$0xf]
  %v287 = vld [vmem:[%s2 + $0x394] sm:$0xf]
  %v288 = vld [vmem:[%s2 + $0x398] sm:$0xf]
  %v289 = vld [vmem:[%s2 + $0x39c] sm:$0xf]
  %v290 = vld [vmem:[%s2 + $0x3a0] sm:$0xf]
  %v291 = vld [vmem:[%s2 + $0x3a4] sm:$0xf]
  %v292 = vld [vmem:[%s2 + $0x3a8] sm:$0xf]
  %v293 = vld [vmem:[%s2 + $0x3ac] sm:$0xf]
  %v294 = vld [vmem:[%s2 + $0x3b0] sm:$0xf]
  %v295 = vld [vmem:[%s2 + $0x3b4] sm:$0xf]
  %v296 = vld [vmem:[%s2 + $0x3b8] sm:$0xf]
  %v297 = vld [vmem:[%s2 + $0x3bc] sm:$0xf]
  %v298 = vld [vmem:[%s2 + $0x3c0] sm:$0xf]
  %v299 = vld [vmem:[%s2 + $0x3c4] sm:$0xf]
  %v300 = vld [vmem:[%s2 + $0x3c8] sm:$0xf]
  %v301 = vld [vmem:[%s2 + $0x3cc] sm:$0xf]
  %v302 = vld [vmem:[%s2 + $0x3d0] sm:$0xf]
  %v303 = vld [vmem:[%s2 + $0x3d4] sm:$0xf]
  %v304 = vld [vmem:[%s2 + $0x3d8] sm:$0xf]
  %v305 = vld [vmem:[%s2 + $0x3dc] sm:$0xf]
  %v306 = vld [vmem:[%s2 + $0x3e0] sm:$0xf]
  %v307 = vld [vmem:[%s2 + $0x3e4] sm:$0xf]
  %v308 = vld [vmem:[%s2 + $0x3e8] sm:$0xf]
  %v309 = vld [vmem:[%s2 + $0x3ec] sm:$0xf]
  %v310 = vld [vmem:[%s2 + $0x3f0] sm:$0xf]
  %v311 = vld [vmem:[%s2 + $0x3f4] sm:$0xf]
  %v312 = vld [vmem:[%s2 + $0x3f8] sm:$0xf]
  %v313 = vld [vmem:[%s2 + $0x3fc] sm:$0xf]
  %v442 = vunpack.c.l.b16 %v186
  %v443 = vunpack.c.l.b16 %v187
  %v444 = vunpack.c.l.b16 %v188
  %v445 = vunpack.c.l.b16 %v189
  %v446 = vunpack.c.l.b16 %v190
  %v447 = vunpack.c.l.b16 %v191
  %v448 = vunpack.c.l.b16 %v192
  %v449 = vunpack.c.l.b16 %v193
  %v450 = vunpack.c.l.b16 %v194
  %v451 = vunpack.c.l.b16 %v195
  %v452 = vunpack.c.l.b16 %v196
  %v453 = vunpack.c.l.b16 %v197
  %v454 = vunpack.c.l.b16 %v198
  %v455 = vunpack.c.l.b16 %v199
  %v456 = vunpack.c.l.b16 %v200
  %v457 = vunpack.c.l.b16 %v201
  %v458 = vunpack.c.l.b16 %v202
  %v459 = vunpack.c.l.b16 %v203
  %v460 = vunpack.c.l.b16 %v204
  %v461 = vunpack.c.l.b16 %v205
  %v462 = vunpack.c.l.b16 %v206
  %v463 = vunpack.c.l.b16 %v207
  %v464 = vunpack.c.l.b16 %v208
  %v465 = vunpack.c.l.b16 %v209
  %v466 = vunpack.c.l.b16 %v210
  %v467 = vunpack.c.l.b16 %v211
  %v468 = vunpack.c.l.b16 %v212
  %v469 = vunpack.c.l.b16 %v213
  %v470 = vunpack.c.l.b16 %v214
  %v471 = vunpack.c.l.b16 %v215
  %v472 = vunpack.c.l.b16 %v216
  %v473 = vunpack.c.l.b16 %v217
  %v474 = vunpack.c.l.b16 %v218
  %v475 = vunpack.c.l.b16 %v219
  %v476 = vunpack.c.l.b16 %v220
  %v477 = vunpack.c.l.b16 %v221
  %v478 = vunpack.c.l.b16 %v222
  %v479 = vunpack.c.l.b16 %v223
  %v480 = vunpack.c.l.b16 %v224
  %v481 = vunpack.c.l.b16 %v225
  %v482 = vunpack.c.l.b16 %v226
  %v483 = vunpack.c.l.b16 %v227
  %v484 = vunpack.c.l.b16 %v228
  %v485 = vunpack.c.l.b16 %v229
  %v486 = vunpack.c.l.b16 %v230
  %v487 = vunpack.c.l.b16 %v231
  %v488 = vunpack.c.l.b16 %v232
  %v489 = vunpack.c.l.b16 %v233
  %v490 = vunpack.c.l.b16 %v234
  %v491 = vunpack.c.l.b16 %v235
  %v492 = vunpack.c.l.b16 %v236
  %v493 = vunpack.c.l.b16 %v237
  %v494 = vunpack.c.l.b16 %v238
  %v495 = vunpack.c.l.b16 %v239
  %v496 = vunpack.c.l.b16 %v240
  %v497 = vunpack.c.l.b16 %v241
  %v498 = vunpack.c.l.b16 %v242
  %v499 = vunpack.c.l.b16 %v243
  %v500 = vunpack.c.l.b16 %v244
  %v501 = vunpack.c.l.b16 %v245
  %v502 = vunpack.c.l.b16 %v246
  %v503 = vunpack.c.l.b16 %v247
  %v504 = vunpack.c.l.b16 %v248
  %v505 = vunpack.c.l.b16 %v249
  %v506 = vunpack.c.l.b16 %v250
  %v507 = vunpack.c.l.b16 %v251
  %v508 = vunpack.c.l.b16 %v252
  %v509 = vunpack.c.l.b16 %v253
  %v510 = vunpack.c.l.b16 %v254
  %v511 = vunpack.c.l.b16 %v255
  %v512 = vunpack.c.l.b16 %v256
  %v513 = vunpack.c.l.b16 %v257
  %v514 = vunpack.c.l.b16 %v258
  %v515 = vunpack.c.l.b16 %v259
  %v516 = vunpack.c.l.b16 %v260
  %v517 = vunpack.c.l.b16 %v261
  %v518 = vunpack.c.l.b16 %v262
  %v519 = vunpack.c.l.b16 %v263
  %v520 = vunpack.c.l.b16 %v264
  %v521 = vunpack.c.l.b16 %v265
  %v522 = vunpack.c.l.b16 %v266
  %v523 = vunpack.c.l.b16 %v267
  %v524 = vunpack.c.l.b16 %v268
  %v525 = vunpack.c.l.b16 %v269
  %v526 = vunpack.c.l.b16 %v270
  %v527 = vunpack.c.l.b16 %v271
  %v528 = vunpack.c.l.b16 %v272
  %v529 = vunpack.c.l.b16 %v273
  %v530 = vunpack.c.l.b16 %v274
  %v531 = vunpack.c.l.b16 %v275
  %v532 = vunpack.c.l.b16 %v276
  %v533 = vunpack.c.l.b16 %v277
  %v534 = vunpack.c.l.b16 %v278
  %v535 = vunpack.c.l.b16 %v279
  %v536 = vunpack.c.l.b16 %v280
  %v537 = vunpack.c.l.b16 %v281
  %v538 = vunpack.c.l.b16 %v282
  %v539 = vunpack.c.l.b16 %v283
  %v540 = vunpack.c.l.b16 %v284
  %v541 = vunpack.c.l.b16 %v285
  %v542 = vunpack.c.l.b16 %v286
  %v543 = vunpack.c.l.b16 %v287
  %v544 = vunpack.c.l.b16 %v288
  %v545 = vunpack.c.l.b16 %v289
  %v546 = vunpack.c.l.b16 %v290
  %v547 = vunpack.c.l.b16 %v291
  %v548 = vunpack.c.l.b16 %v292
  %v549 = vunpack.c.l.b16 %v293
  %v550 = vunpack.c.l.b16 %v294
  %v551 = vunpack.c.l.b16 %v295
  %v552 = vunpack.c.l.b16 %v296
  %v553 = vunpack.c.l.b16 %v297
  %v554 = vunpack.c.l.b16 %v298
  %v555 = vunpack.c.l.b16 %v299
  %v556 = vunpack.c.l.b16 %v300
  %v557 = vunpack.c.l.b16 %v301
  %v558 = vunpack.c.l.b16 %v302
  %v559 = vunpack.c.l.b16 %v303
  %v560 = vunpack.c.l.b16 %v304
  %v561 = vunpack.c.l.b16 %v305
  %v562 = vunpack.c.l.b16 %v306
  %v563 = vunpack.c.l.b16 %v307
  %v564 = vunpack.c.l.b16 %v308
  %v565 = vunpack.c.l.b16 %v309
  %v566 = vunpack.c.l.b16 %v310
  %v567 = vunpack.c.l.b16 %v311
  %v568 = vunpack.c.l.b16 %v312
  %v569 = vunpack.c.l.b16 %v313
  %v570 = vpack.c.b16 %v443, %v442
  %v571 = vpack.c.b16 %v445, %v444
  %v572 = vpack.c.b16 %v447, %v446
  %v573 = vpack.c.b16 %v449, %v448
  %v574 = vpack.c.b16 %v451, %v450
  %v575 = vpack.c.b16 %v453, %v452
  %v576 = vpack.c.b16 %v455, %v454
  %v577 = vpack.c.b16 %v457, %v456
  %v578 = vpack.c.b16 %v459, %v458
  %v579 = vpack.c.b16 %v461, %v460
  %v580 = vpack.c.b16 %v463, %v462
  %v581 = vpack.c.b16 %v465, %v464
  %v582 = vpack.c.b16 %v467, %v466
  %v583 = vpack.c.b16 %v469, %v468
  %v584 = vpack.c.b16 %v471, %v470
  %v585 = vpack.c.b16 %v473, %v472
  %v586 = vpack.c.b16 %v475, %v474
  %v587 = vpack.c.b16 %v477, %v476
  %v588 = vpack.c.b16 %v479, %v478
  %v589 = vpack.c.b16 %v481, %v480
  %v590 = vpack.c.b16 %v483, %v482
  %v591 = vpack.c.b16 %v485, %v484
  %v592 = vpack.c.b16 %v487, %v486
  %v593 = vpack.c.b16 %v489, %v488
  %v594 = vpack.c.b16 %v491, %v490
  %v595 = vpack.c.b16 %v493, %v492
  %v596 = vpack.c.b16 %v495, %v494
  %v597 = vpack.c.b16 %v497, %v496
  %v598 = vpack.c.b16 %v499, %v498
  %v599 = vpack.c.b16 %v501, %v500
  %v600 = vpack.c.b16 %v503, %v502
  %v601 = vpack.c.b16 %v505, %v504
  %v602 = vpack.c.b16 %v507, %v506
  %v603 = vpack.c.b16 %v509, %v508
  %v604 = vpack.c.b16 %v511, %v510
  %v605 = vpack.c.b16 %v513, %v512
  %v606 = vpack.c.b16 %v515, %v514
  %v607 = vpack.c.b16 %v517, %v516
  %v608 = vpack.c.b16 %v519, %v518
  %v609 = vpack.c.b16 %v521, %v520
  %v610 = vpack.c.b16 %v523, %v522
  %v611 = vpack.c.b16 %v525, %v524
  %v612 = vpack.c.b16 %v527, %v526
  %v613 = vpack.c.b16 %v529, %v528
  %v614 = vpack.c.b16 %v531, %v530
  %v615 = vpack.c.b16 %v533, %v532
  %v616 = vpack.c.b16 %v535, %v534
  %v617 = vpack.c.b16 %v537, %v536
  %v618 = vpack.c.b16 %v539, %v538
  %v619 = vpack.c.b16 %v541, %v540
  %v620 = vpack.c.b16 %v543, %v542
  %v621 = vpack.c.b16 %v545, %v544
  %v622 = vpack.c.b16 %v547, %v546
  %v623 = vpack.c.b16 %v549, %v548
  %v624 = vpack.c.b16 %v551, %v550
  %v625 = vpack.c.b16 %v553, %v552
  %v626 = vpack.c.b16 %v555, %v554
  %v627 = vpack.c.b16 %v557, %v556
  %v628 = vpack.c.b16 %v559, %v558
  %v629 = vpack.c.b16 %v561, %v560
  %v630 = vpack.c.b16 %v563, %v562
  %v631 = vpack.c.b16 %v565, %v564
  %v632 = vpack.c.b16 %v567, %v566
  %v633 = vpack.c.b16 %v569, %v568
  %698 = vmatprep.subr.bf16.mxu0 0
  %699 = vmatpush1.bf16.msra.mxu0 %v577
  %700 = vmatprep.subr.bf16.mxu0 0
  %701 = vmatpush1.bf16.msra.mxu0 %v576
  %702 = vmatprep.subr.bf16.mxu0 0
  %703 = vmatpush1.bf16.msra.mxu0 %v575
  %704 = vmatprep.subr.bf16.mxu0 0
  %705 = vmatpush1.bf16.msra.mxu0 %v574
  %706 = vmatprep.subr.bf16.mxu0 0
  %707 = vmatpush1.bf16.msra.mxu0 %v573
  %708 = vmatprep.subr.bf16.mxu0 0
  %709 = vmatpush1.bf16.msra.mxu0 %v572
  %710 = vmatprep.subr.bf16.mxu0 0
  %711 = vmatpush1.bf16.msra.mxu0 %v571
  %712 = vmatprep.subr.bf16.mxu0 0
  %713 = vmatpush1.bf16.msra.mxu0 %v570
  %714 = vmatprep.subr.bf16.mxu0 0
  %715 = vmatpush2.bf16.msra.mxu0 %v585
  %716 = vmatprep.subr.bf16.mxu0 0
  %717 = vmatpush2.bf16.msra.mxu0 %v584
  %718 = vmatprep.subr.bf16.mxu0 0
  %719 = vmatpush2.bf16.msra.mxu0 %v583
  %720 = vmatprep.subr.bf16.mxu0 0
  %721 = vmatpush2.bf16.msra.mxu0 %v582
  %722 = vmatprep.subr.bf16.mxu0 0
  %723 = vmatpush2.bf16.msra.mxu0 %v581
  %724 = vmatprep.subr.bf16.mxu0 0
  %725 = vmatpush2.bf16.msra.mxu0 %v580
  %726 = vmatprep.subr.bf16.mxu0 0
  %727 = vmatpush2.bf16.msra.mxu0 %v579
  %728 = vmatprep.subr.bf16.mxu0 0
  %729 = vmatpush2.bf16.msra.mxu0 %v578
  %730 = vmatprep.mubr.bf16.mxu0 %v51
  %731 = vmatmul.mubr.bf16.gmra.mxu0 %v50
  %v732 = vpop.f32.mrf.mxu0
  %v733 = vadd.f32 0.0, %v732
  %v734 = vpop.f32.mrf.mxu0
  %v735 = vpop.f32.mrf.mxu0
  %v736 = vpop.f32.mrf.mxu0
  %737 = vdwg.mxu0
  %738 = vmatprep.subr.bf16.mxu0 0
  %739 = vmatpush1.bf16.msra.mxu0 %v593
  %740 = vmatprep.subr.bf16.mxu0 0
  %741 = vmatpush1.bf16.msra.mxu0 %v592
  %742 = vmatprep.subr.bf16.mxu0 0
  %743 = vmatpush1.bf16.msra.mxu0 %v591
  %744 = vmatprep.subr.bf16.mxu0 0
  %745 = vmatpush1.bf16.msra.mxu0 %v590
  %746 = vmatprep.subr.bf16.mxu0 0
  %747 = vmatpush1.bf16.msra.mxu0 %v589
  %748 = vmatprep.subr.bf16.mxu0 0
  %749 = vmatpush1.bf16.msra.mxu0 %v588
  %750 = vmatprep.subr.bf16.mxu0 0
  %751 = vmatpush1.bf16.msra.mxu0 %v587
  %752 = vmatprep.subr.bf16.mxu0 0
  %753 = vmatpush1.bf16.msra.mxu0 %v586
  %754 = vmatprep.subr.bf16.mxu0 0
  %755 = vmatpush2.bf16.msra.mxu0 %v601
  %756 = vmatprep.subr.bf16.mxu0 0
  %757 = vmatpush2.bf16.msra.mxu0 %v600
  %758 = vmatprep.subr.bf16.mxu0 0
  %759 = vmatpush2.bf16.msra.mxu0 %v599
  %760 = vmatprep.subr.bf16.mxu0 0
  %761 = vmatpush2.bf16.msra.mxu0 %v598
  %762 = vmatprep.subr.bf16.mxu0 0
  %763 = vmatpush2.bf16.msra.mxu0 %v597
  %764 = vmatprep.subr.bf16.mxu0 0
  %765 = vmatpush2.bf16.msra.mxu0 %v596
  %766 = vmatprep.subr.bf16.mxu0 0
  %767 = vmatpush2.bf16.msra.mxu0 %v595
  %768 = vmatprep.subr.bf16.mxu0 0
  %769 = vmatpush2.bf16.msra.mxu0 %v594
  %770 = vmatprep.mubr.bf16.mxu0 %v53
  %771 = vmatmul.mubr.bf16.gmra.mxu0 %v52
  %v772 = vpop.f32.mrf.mxu0
  %v773 = vadd.f32 %v733, %v772
  %v774 = vpop.f32.mrf.mxu0
  %v775 = vpop.f32.mrf.mxu0
  %v776 = vpop.f32.mrf.mxu0
  %777 = vdwg.mxu0
  %778 = vmatprep.subr.bf16.mxu0 0
  %779 = vmatpush1.bf16.msra.mxu0 %v609
  %780 = vmatprep.subr.bf16.mxu0 0
  %781 = vmatpush1.bf16.msra.mxu0 %v608
  %782 = vmatprep.subr.bf16.mxu0 0
  %783 = vmatpush1.bf16.msra.mxu0 %v607
  %784 = vmatprep.subr.bf16.mxu0 0
  %785 = vmatpush1.bf16.msra.mxu0 %v606
  %786 = vmatprep.subr.bf16.mxu0 0
  %787 = vmatpush1.bf16.msra.mxu0 %v605
  %788 = vmatprep.subr.bf16.mxu0 0
  %789 = vmatpush1.bf16.msra.mxu0 %v604
  %790 = vmatprep.subr.bf16.mxu0 0
  %791 = vmatpush1.bf16.msra.mxu0 %v603
  %792 = vmatprep.subr.bf16.mxu0 0
  %793 = vmatpush1.bf16.msra.mxu0 %v602
  %794 = vmatprep.subr.bf16.mxu0 0
  %795 = vmatpush2.bf16.msra.mxu0 %v617
  %796 = vmatprep.subr.bf16.mxu0 0
  %797 = vmatpush2.bf16.msra.mxu0 %v616
  %798 = vmatprep.subr.bf16.mxu0 0
  %799 = vmatpush2.bf16.msra.mxu0 %v615
  %800 = vmatprep.subr.bf16.mxu0 0
  %801 = vmatpush2.bf16.msra.mxu0 %v614
  %802 = vmatprep.subr.bf16.mxu0 0
  %803 = vmatpush2.bf16.msra.mxu0 %v613
  %804 = vmatprep.subr.bf16.mxu0 0
  %805 = vmatpush2.bf16.msra.mxu0 %v612
  %806 = vmatprep.subr.bf16.mxu0 0
  %807 = vmatpush2.bf16.msra.mxu0 %v611
  %808 = vmatprep.subr.bf16.mxu0 0
  %809 = vmatpush2.bf16.msra.mxu0 %v610
  %810 = vmatprep.mubr.bf16.mxu0 %v55
  %811 = vmatmul.mubr.bf16.gmra.mxu0 %v54
  %v812 = vpop.f32.mrf.mxu0
  %v813 = vadd.f32 %v773, %v812
  %v814 = vpop.f32.mrf.mxu0
  %v815 = vpop.f32.mrf.mxu0
  %v816 = vpop.f32.mrf.mxu0
  %817 = vdwg.mxu0
  %818 = vmatprep.subr.bf16.mxu0 0
  %819 = vmatpush1.bf16.msra.mxu0 %v625
  %820 = vmatprep.subr.bf16.mxu0 0
  %821 = vmatpush1.bf16.msra.mxu0 %v624
  %822 = vmatprep.subr.bf16.mxu0 0
  %823 = vmatpush1.bf16.msra.mxu0 %v623
  %824 = vmatprep.subr.bf16.mxu0 0
  %825 = vmatpush1.bf16.msra.mxu0 %v622
  %826 = vmatprep.subr.bf16.mxu0 0
  %827 = vmatpush1.bf16.msra.mxu0 %v621
  %828 = vmatprep.subr.bf16.mxu0 0
  %829 = vmatpush1.bf16.msra.mxu0 %v620
  %830 = vmatprep.subr.bf16.mxu0 0
  %831 = vmatpush1.bf16.msra.mxu0 %v619
  %832 = vmatprep.subr.bf16.mxu0 0
  %833 = vmatpush1.bf16.msra.mxu0 %v618
  %834 = vmatprep.subr.bf16.mxu0 0
  %835 = vmatpush2.bf16.msra.mxu0 %v633
  %836 = vmatprep.subr.bf16.mxu0 0
  %837 = vmatpush2.bf16.msra.mxu0 %v632
  %838 = vmatprep.subr.bf16.mxu0 0
  %839 = vmatpush2.bf16.msra.mxu0 %v631
  %840 = vmatprep.subr.bf16.mxu0 0
  %841 = vmatpush2.bf16.msra.mxu0 %v630
  %842 = vmatprep.subr.bf16.mxu0 0
  %843 = vmatpush2.bf16.msra.mxu0 %v629
  %844 = vmatprep.subr.bf16.mxu0 0
  %845 = vmatpush2.bf16.msra.mxu0 %v628
  %846 = vmatprep.subr.bf16.mxu0 0
  %847 = vmatpush2.bf16.msra.mxu0 %v627
  %848 = vmatprep.subr.bf16.mxu0 0
  %849 = vmatpush2.bf16.msra.mxu0 %v626
  %850 = vmatprep.mubr.bf16.mxu0 %v57
  %851 = vmatmul.mubr.bf16.gmra.mxu0 %v56
  %v852 = vpop.f32.mrf.mxu0
  %v853 = vadd.f32 %v813, %v852
  %v854 = vpop.f32.mrf.mxu0
  %v855 = vpop.f32.mrf.mxu0
  %v856 = vpop.f32.mrf.mxu0
  %857 = vdwg.mxu0
  %v986 = vunpack.c.l.b16 %v58
  %v987 = vunpack.c.l.b16 %v59
  %v988 = vunpack.c.l.b16 %v60
  %v989 = vunpack.c.l.b16 %v61
  %v990 = vunpack.c.l.b16 %v62
  %v991 = vunpack.c.l.b16 %v63
  %v992 = vunpack.c.l.b16 %v64
  %v993 = vunpack.c.l.b16 %v65
  %v994 = vunpack.c.l.b16 %v66
  %v995 = vunpack.c.l.b16 %v67
  %v996 = vunpack.c.l.b16 %v68
  %v997 = vunpack.c.l.b16 %v69
  %v998 = vunpack.c.l.b16 %v70
  %v999 = vunpack.c.l.b16 %v71
  %v1000 = vunpack.c.l.b16 %v72
  %v1001 = vunpack.c.l.b16 %v73
  %v1002 = vunpack.c.l.b16 %v74
  %v1003 = vunpack.c.l.b16 %v75
  %v1004 = vunpack.c.l.b16 %v76
  %v1005 = vunpack.c.l.b16 %v77
  %v1006 = vunpack.c.l.b16 %v78
  %v1007 = vunpack.c.l.b16 %v79
  %v1008 = vunpack.c.l.b16 %v80
  %v1009 = vunpack.c.l.b16 %v81
  %v1010 = vunpack.c.l.b16 %v82
  %v1011 = vunpack.c.l.b16 %v83
  %v1012 = vunpack.c.l.b16 %v84
  %v1013 = vunpack.c.l.b16 %v85
  %v1014 = vunpack.c.l.b16 %v86
  %v1015 = vunpack.c.l.b16 %v87
  %v1016 = vunpack.c.l.b16 %v88
  %v1017 = vunpack.c.l.b16 %v89
  %v1018 = vunpack.c.l.b16 %v90
  %v1019 = vunpack.c.l.b16 %v91
  %v1020 = vunpack.c.l.b16 %v92
  %v1021 = vunpack.c.l.b16 %v93
  %v1022 = vunpack.c.l.b16 %v94
  %v1023 = vunpack.c.l.b16 %v95
  %v1024 = vunpack.c.l.b16 %v96
  %v1025 = vunpack.c.l.b16 %v97
  %v1026 = vunpack.c.l.b16 %v98
  %v1027 = vunpack.c.l.b16 %v99
  %v1028 = vunpack.c.l.b16 %v100
  %v1029 = vunpack.c.l.b16 %v101
  %v1030 = vunpack.c.l.b16 %v102
  %v1031 = vunpack.c.l.b16 %v103
  %v1032 = vunpack.c.l.b16 %v104
  %v1033 = vunpack.c.l.b16 %v105
  %v1034 = vunpack.c.l.b16 %v106
  %v1035 = vunpack.c.l.b16 %v107
  %v1036 = vunpack.c.l.b16 %v108
  %v1037 = vunpack.c.l.b16 %v109
  %v1038 = vunpack.c.l.b16 %v110
  %v1039 = vunpack.c.l.b16 %v111
  %v1040 = vunpack.c.l.b16 %v112
  %v1041 = vunpack.c.l.b16 %v113
  %v1042 = vunpack.c.l.b16 %v114
  %v1043 = vunpack.c.l.b16 %v115
  %v1044 = vunpack.c.l.b16 %v116
  %v1045 = vunpack.c.l.b16 %v117
  %v1046 = vunpack.c.l.b16 %v118
  %v1047 = vunpack.c.l.b16 %v119
  %v1048 = vunpack.c.l.b16 %v120
  %v1049 = vunpack.c.l.b16 %v121
  %v1050 = vunpack.c.l.b16 %v122
  %v1051 = vunpack.c.l.b16 %v123
  %v1052 = vunpack.c.l.b16 %v124
  %v1053 = vunpack.c.l.b16 %v125
  %v1054 = vunpack.c.l.b16 %v126
  %v1055 = vunpack.c.l.b16 %v127
  %v1056 = vunpack.c.l.b16 %v128
  %v1057 = vunpack.c.l.b16 %v129
  %v1058 = vunpack.c.l.b16 %v130
  %v1059 = vunpack.c.l.b16 %v131
  %v1060 = vunpack.c.l.b16 %v132
  %v1061 = vunpack.c.l.b16 %v133
  %v1062 = vunpack.c.l.b16 %v134
  %v1063 = vunpack.c.l.b16 %v135
  %v1064 = vunpack.c.l.b16 %v136
  %v1065 = vunpack.c.l.b16 %v137
  %v1066 = vunpack.c.l.b16 %v138
  %v1067 = vunpack.c.l.b16 %v139
  %v1068 = vunpack.c.l.b16 %v140
  %v1069 = vunpack.c.l.b16 %v141
  %v1070 = vunpack.c.l.b16 %v142
  %v1071 = vunpack.c.l.b16 %v143
  %v1072 = vunpack.c.l.b16 %v144
  %v1073 = vunpack.c.l.b16 %v145
  %v1074 = vunpack.c.l.b16 %v146
  %v1075 = vunpack.c.l.b16 %v147
  %v1076 = vunpack.c.l.b16 %v148
  %v1077 = vunpack.c.l.b16 %v149
  %v1078 = vunpack.c.l.b16 %v150
  %v1079 = vunpack.c.l.b16 %v151
  %v1080 = vunpack.c.l.b16 %v152
  %v1081 = vunpack.c.l.b16 %v153
  %v1082 = vunpack.c.l.b16 %v154
  %v1083 = vunpack.c.l.b16 %v155
  %v1084 = vunpack.c.l.b16 %v156
  %v1085 = vunpack.c.l.b16 %v157
  %v1086 = vunpack.c.l.b16 %v158
  %v1087 = vunpack.c.l.b16 %v159
  %v1088 = vunpack.c.l.b16 %v160
  %v1089 = vunpack.c.l.b16 %v161
  %v1090 = vunpack.c.l.b16 %v162
  %v1091 = vunpack.c.l.b16 %v163
  %v1092 = vunpack.c.l.b16 %v164
  %v1093 = vunpack.c.l.b16 %v165
  %v1094 = vunpack.c.l.b16 %v166
  %v1095 = vunpack.c.l.b16 %v167
  %v1096 = vunpack.c.l.b16 %v168
  %v1097 = vunpack.c.l.b16 %v169
  %v1098 = vunpack.c.l.b16 %v170
  %v1099 = vunpack.c.l.b16 %v171
  %v1100 = vunpack.c.l.b16 %v172
  %v1101 = vunpack.c.l.b16 %v173
  %v1102 = vunpack.c.l.b16 %v174
  %v1103 = vunpack.c.l.b16 %v175
  %v1104 = vunpack.c.l.b16 %v176
  %v1105 = vunpack.c.l.b16 %v177
  %v1106 = vunpack.c.l.b16 %v178
  %v1107 = vunpack.c.l.b16 %v179
  %v1108 = vunpack.c.l.b16 %v180
  %v1109 = vunpack.c.l.b16 %v181
  %v1110 = vunpack.c.l.b16 %v182
  %v1111 = vunpack.c.l.b16 %v183
  %v1112 = vunpack.c.l.b16 %v184
  %v1113 = vunpack.c.l.b16 %v185
  %v1114 = vpack.c.b16 %v987, %v986
  %v1115 = vpack.c.b16 %v989, %v988
  %v1116 = vpack.c.b16 %v991, %v990
  %v1117 = vpack.c.b16 %v993, %v992
  %v1118 = vpack.c.b16 %v995, %v994
  %v1119 = vpack.c.b16 %v997, %v996
  %v1120 = vpack.c.b16 %v999, %v998
  %v1121 = vpack.c.b16 %v1001, %v1000
  %v1122 = vpack.c.b16 %v1003, %v1002
  %v1123 = vpack.c.b16 %v1005, %v1004
  %v1124 = vpack.c.b16 %v1007, %v1006
  %v1125 = vpack.c.b16 %v1009, %v1008
  %v1126 = vpack.c.b16 %v1011, %v1010
  %v1127 = vpack.c.b16 %v1013, %v1012
  %v1128 = vpack.c.b16 %v1015, %v1014
  %v1129 = vpack.c.b16 %v1017, %v1016
  %v1130 = vpack.c.b16 %v1019, %v1018
  %v1131 = vpack.c.b16 %v1021, %v1020
  %v1132 = vpack.c.b16 %v1023, %v1022
  %v1133 = vpack.c.b16 %v1025, %v1024
  %v1134 = vpack.c.b16 %v1027, %v1026
  %v1135 = vpack.c.b16 %v1029, %v1028
  %v1136 = vpack.c.b16 %v1031, %v1030
  %v1137 = vpack.c.b16 %v1033, %v1032
  %v1138 = vpack.c.b16 %v1035, %v1034
  %v1139 = vpack.c.b16 %v1037, %v1036
  %v1140 = vpack.c.b16 %v1039, %v1038
  %v1141 = vpack.c.b16 %v1041, %v1040
  %v1142 = vpack.c.b16 %v1043, %v1042
  %v1143 = vpack.c.b16 %v1045, %v1044
  %v1144 = vpack.c.b16 %v1047, %v1046
  %v1145 = vpack.c.b16 %v1049, %v1048
  %v1146 = vpack.c.b16 %v1051, %v1050
  %v1147 = vpack.c.b16 %v1053, %v1052
  %v1148 = vpack.c.b16 %v1055, %v1054
  %v1149 = vpack.c.b16 %v1057, %v1056
  %v1150 = vpack.c.b16 %v1059, %v1058
  %v1151 = vpack.c.b16 %v1061, %v1060
  %v1152 = vpack.c.b16 %v1063, %v1062
  %v1153 = vpack.c.b16 %v1065, %v1064
  %v1154 = vpack.c.b16 %v1067, %v1066
  %v1155 = vpack.c.b16 %v1069, %v1068
  %v1156 = vpack.c.b16 %v1071, %v1070
  %v1157 = vpack.c.b16 %v1073, %v1072
  %v1158 = vpack.c.b16 %v1075, %v1074
  %v1159 = vpack.c.b16 %v1077, %v1076
  %v1160 = vpack.c.b16 %v1079, %v1078
  %v1161 = vpack.c.b16 %v1081, %v1080
  %v1162 = vpack.c.b16 %v1083, %v1082
  %v1163 = vpack.c.b16 %v1085, %v1084
  %v1164 = vpack.c.b16 %v1087, %v1086
  %v1165 = vpack.c.b16 %v1089, %v1088
  %v1166 = vpack.c.b16 %v1091, %v1090
  %v1167 = vpack.c.b16 %v1093, %v1092
  %v1168 = vpack.c.b16 %v1095, %v1094
  %v1169 = vpack.c.b16 %v1097, %v1096
  %v1170 = vpack.c.b16 %v1099, %v1098
  %v1171 = vpack.c.b16 %v1101, %v1100
  %v1172 = vpack.c.b16 %v1103, %v1102
  %v1173 = vpack.c.b16 %v1105, %v1104
  %v1174 = vpack.c.b16 %v1107, %v1106
  %v1175 = vpack.c.b16 %v1109, %v1108
  %v1176 = vpack.c.b16 %v1111, %v1110
  %v1177 = vpack.c.b16 %v1113, %v1112
  %1242 = vmatprep.subr.bf16.mxu0 0
  %1243 = vmatpush1.bf16.msra.mxu0 %v1121
  %1244 = vmatprep.subr.bf16.mxu0 0
  %1245 = vmatpush1.bf16.msra.mxu0 %v1120
  %1246 = vmatprep.subr.bf16.mxu0 0
  %1247 = vmatpush1.bf16.msra.mxu0 %v1119
  %1248 = vmatprep.subr.bf16.mxu0 0
  %1249 = vmatpush1.bf16.msra.mxu0 %v1118
  %1250 = vmatprep.subr.bf16.mxu0 0
  %1251 = vmatpush1.bf16.msra.mxu0 %v1117
  %1252 = vmatprep.subr.bf16.mxu0 0
  %1253 = vmatpush1.bf16.msra.mxu0 %v1116
  %1254 = vmatprep.subr.bf16.mxu0 0
  %1255 = vmatpush1.bf16.msra.mxu0 %v1115
  %1256 = vmatprep.subr.bf16.mxu0 0
  %1257 = vmatpush1.bf16.msra.mxu0 %v1114
  %1258 = vmatprep.subr.bf16.mxu0 0
  %1259 = vmatpush2.bf16.msra.mxu0 %v1129
  %1260 = vmatprep.subr.bf16.mxu0 0
  %1261 = vmatpush2.bf16.msra.mxu0 %v1128
  %1262 = vmatprep.subr.bf16.mxu0 0
  %1263 = vmatpush2.bf16.msra.mxu0 %v1127
  %1264 = vmatprep.subr.bf16.mxu0 0
  %1265 = vmatpush2.bf16.msra.mxu0 %v1126
  %1266 = vmatprep.subr.bf16.mxu0 0
  %1267 = vmatpush2.bf16.msra.mxu0 %v1125
  %1268 = vmatprep.subr.bf16.mxu0 0
  %1269 = vmatpush2.bf16.msra.mxu0 %v1124
  %1270 = vmatprep.subr.bf16.mxu0 0
  %1271 = vmatpush2.bf16.msra.mxu0 %v1123
  %1272 = vmatprep.subr.bf16.mxu0 0
  %1273 = vmatpush2.bf16.msra.mxu0 %v1122
  %1274 = vmatprep.mubr.bf16.mxu0 %v35
  %1275 = vmatmul.mubr.bf16.gmra.mxu0 %v34
  %v1276 = vpop.f32.mrf.mxu0
  %v1277 = vadd.f32 %v853, %v1276
  %v1278 = vpop.f32.mrf.mxu0
  %v1279 = vpop.f32.mrf.mxu0
  %v1280 = vpop.f32.mrf.mxu0
  %1281 = vdwg.mxu0
  %1282 = vmatprep.subr.bf16.mxu0 0
  %1283 = vmatpush1.bf16.msra.mxu0 %v1137
  %1284 = vmatprep.subr.bf16.mxu0 0
  %1285 = vmatpush1.bf16.msra.mxu0 %v1136
  %1286 = vmatprep.subr.bf16.mxu0 0
  %1287 = vmatpush1.bf16.msra.mxu0 %v1135
  %1288 = vmatprep.subr.bf16.mxu0 0
  %1289 = vmatpush1.bf16.msra.mxu0 %v1134
  %1290 = vmatprep.subr.bf16.mxu0 0
  %1291 = vmatpush1.bf16.msra.mxu0 %v1133
  %1292 = vmatprep.subr.bf16.mxu0 0
  %1293 = vmatpush1.bf16.msra.mxu0 %v1132
  %1294 = vmatprep.subr.bf16.mxu0 0
  %1295 = vmatpush1.bf16.msra.mxu0 %v1131
  %1296 = vmatprep.subr.bf16.mxu0 0
  %1297 = vmatpush1.bf16.msra.mxu0 %v1130
  %1298 = vmatprep.subr.bf16.mxu0 0
  %1299 = vmatpush2.bf16.msra.mxu0 %v1145
  %1300 = vmatprep.subr.bf16.mxu0 0
  %1301 = vmatpush2.bf16.msra.mxu0 %v1144
  %1302 = vmatprep.subr.bf16.mxu0 0
  %1303 = vmatpush2.bf16.msra.mxu0 %v1143
  %1304 = vmatprep.subr.bf16.mxu0 0
  %1305 = vmatpush2.bf16.msra.mxu0 %v1142
  %1306 = vmatprep.subr.bf16.mxu0 0
  %1307 = vmatpush2.bf16.msra.mxu0 %v1141
  %1308 = vmatprep.subr.bf16.mxu0 0
  %1309 = vmatpush2.bf16.msra.mxu0 %v1140
  %1310 = vmatprep.subr.bf16.mxu0 0
  %1311 = vmatpush2.bf16.msra.mxu0 %v1139
  %1312 = vmatprep.subr.bf16.mxu0 0
  %1313 = vmatpush2.bf16.msra.mxu0 %v1138
  %1314 = vmatprep.mubr.bf16.mxu0 %v37
  %1315 = vmatmul.mubr.bf16.gmra.mxu0 %v36
  %v1316 = vpop.f32.mrf.mxu0
  %v1317 = vadd.f32 %v1277, %v1316
  %v1318 = vpop.f32.mrf.mxu0
  %v1319 = vpop.f32.mrf.mxu0
  %v1320 = vpop.f32.mrf.mxu0
  %1321 = vdwg.mxu0
  %1322 = vmatprep.subr.bf16.mxu0 0
  %1323 = vmatpush1.bf16.msra.mxu0 %v1153
  %1324 = vmatprep.subr.bf16.mxu0 0
  %1325 = vmatpush1.bf16.msra.mxu0 %v1152
  %1326 = vmatprep.subr.bf16.mxu0 0
  %1327 = vmatpush1.bf16.msra.mxu0 %v1151
  %1328 = vmatprep.subr.bf16.mxu0 0
  %1329 = vmatpush1.bf16.msra.mxu0 %v1150
  %1330 = vmatprep.subr.bf16.mxu0 0
  %1331 = vmatpush1.bf16.msra.mxu0 %v1149
  %1332 = vmatprep.subr.bf16.mxu0 0
  %1333 = vmatpush1.bf16.msra.mxu0 %v1148
  %1334 = vmatprep.subr.bf16.mxu0 0
  %1335 = vmatpush1.bf16.msra.mxu0 %v1147
  %1336 = vmatprep.subr.bf16.mxu0 0
  %1337 = vmatpush1.bf16.msra.mxu0 %v1146
  %1338 = vmatprep.subr.bf16.mxu0 0
  %1339 = vmatpush2.bf16.msra.mxu0 %v1161
  %1340 = vmatprep.subr.bf16.mxu0 0
  %1341 = vmatpush2.bf16.msra.mxu0 %v1160
  %1342 = vmatprep.subr.bf16.mxu0 0
  %1343 = vmatpush2.bf16.msra.mxu0 %v1159
  %1344 = vmatprep.subr.bf16.mxu0 0
  %1345 = vmatpush2.bf16.msra.mxu0 %v1158
  %1346 = vmatprep.subr.bf16.mxu0 0
  %1347 = vmatpush2.bf16.msra.mxu0 %v1157
  %1348 = vmatprep.subr.bf16.mxu0 0
  %1349 = vmatpush2.bf16.msra.mxu0 %v1156
  %1350 = vmatprep.subr.bf16.mxu0 0
  %1351 = vmatpush2.bf16.msra.mxu0 %v1155
  %1352 = vmatprep.subr.bf16.mxu0 0
  %1353 = vmatpush2.bf16.msra.mxu0 %v1154
  %1354 = vmatprep.mubr.bf16.mxu0 %v39
  %1355 = vmatmul.mubr.bf16.gmra.mxu0 %v38
  %v1356 = vpop.f32.mrf.mxu0
  %v1357 = vadd.f32 %v1317, %v1356
  %v1358 = vpop.f32.mrf.mxu0
  %v1359 = vpop.f32.mrf.mxu0
  %v1360 = vpop.f32.mrf.mxu0
  %1361 = vdwg.mxu0
  %1362 = vmatprep.subr.bf16.mxu0 0
  %1363 = vmatpush1.bf16.msra.mxu0 %v1169
  %1364 = vmatprep.subr.bf16.mxu0 0
  %1365 = vmatpush1.bf16.msra.mxu0 %v1168
  %1366 = vmatprep.subr.bf16.mxu0 0
  %1367 = vmatpush1.bf16.msra.mxu0 %v1167
  %1368 = vmatprep.subr.bf16.mxu0 0
  %1369 = vmatpush1.bf16.msra.mxu0 %v1166
  %1370 = vmatprep.subr.bf16.mxu0 0
  %1371 = vmatpush1.bf16.msra.mxu0 %v1165
  %1372 = vmatprep.subr.bf16.mxu0 0
  %1373 = vmatpush1.bf16.msra.mxu0 %v1164
  %1374 = vmatprep.subr.bf16.mxu0 0
  %1375 = vmatpush1.bf16.msra.mxu0 %v1163
  %1376 = vmatprep.subr.bf16.mxu0 0
  %1377 = vmatpush1.bf16.msra.mxu0 %v1162
  %1378 = vmatprep.subr.bf16.mxu0 0
  %1379 = vmatpush2.bf16.msra.mxu0 %v1177
  %1380 = vmatprep.subr.bf16.mxu0 0
  %1381 = vmatpush2.bf16.msra.mxu0 %v1176
  %1382 = vmatprep.subr.bf16.mxu0 0
  %1383 = vmatpush2.bf16.msra.mxu0 %v1175
  %1384 = vmatprep.subr.bf16.mxu0 0
  %1385 = vmatpush2.bf16.msra.mxu0 %v1174
  %1386 = vmatprep.subr.bf16.mxu0 0
  %1387 = vmatpush2.bf16.msra.mxu0 %v1173
  %1388 = vmatprep.subr.bf16.mxu0 0
  %1389 = vmatpush2.bf16.msra.mxu0 %v1172
  %1390 = vmatprep.subr.bf16.mxu0 0
  %1391 = vmatpush2.bf16.msra.mxu0 %v1171
  %1392 = vmatprep.subr.bf16.mxu0 0
  %1393 = vmatpush2.bf16.msra.mxu0 %v1170
  %1394 = vmatprep.mubr.bf16.mxu0 %v41
  %1395 = vmatmul.mubr.bf16.gmra.mxu0 %v40
  %v1396 = vpop.f32.mrf.mxu0
  %v1397 = vadd.f32 %v1357, %v1396
  %v1398 = vpop.f32.mrf.mxu0
  %v1399 = vpop.f32.mrf.mxu0
  %v1400 = vpop.f32.mrf.mxu0
  %1401 = vdwg.mxu0
  %v1402 = vld [vmem:[%s3] sm:$0x1]
  %v1404 = vlaneseq
  %v1405 = vshrl.u32 %v1404, 7
  %v1406 = vsub.s32 0, %v1405
  %v1407 = vrot.slane %v1402, %v1406
  %v1409 = vadd.f32 %v1397, %v1407
  %v1410 = vmax.f32 %v1409, 0.0
  %v1411 = vld [vmem:[%s4] sm:$0x1]
  %v1413 = vlaneseq
  %v1414 = vshrl.u32 %v1413, 7
  %v1415 = vsub.s32 0, %v1414
  %v1416 = vrot.slane %v1411, %v1415
  %v1418 = vmul.f32 %v1410, %v1416
  %vm1419 = vcmask 523264
  %v1420 = vsel %vm1419, %v1418, 0.0
  %1421 = vadd.xlane.f32.xlu0 %v1420
  %v1422 = vpop.xlane.xlu0 %1421
  %v1423 = vld [vmem:[#allocation2] sm:$0x1]
  %v1425 = vlaneseq
  %v1426 = vshrl.u32 %v1425, 7
  %v1427 = vsub.s32 0, %v1426
  %v1428 = vrot.slane %v1423, %v1427
  %v1430 = vadd.f32 %v1422, %v1428
  %v1431 = vxor.u32 %v1430, 2147483648
  %v1432 = vmul.f32 %v1431, 1.442695
  %v1433 = vpow.pop %v1432
  %v1434 = vadd.f32 %v1433, 1.0
  %v1435 = vrcp.pop %v1434
  %v1436 = vmul.f32 1.0, %v1435
  %vm1437 = vcmask 7168
  %1438 = vst.msk [vmem:[%s6] sm:$0xff] %vm1437, %v1436
  // Predicated region
  $region26: #{tpu_custom_call.1} parent=0 // pred_check
    _
  $region27: #{tpu_custom_call.1} parent=0 // pred_check_branch
    %1440 = sbr.rel (0) target = $region29
  $region28: #{tpu_custom_call.1} parent=0 // pred_region
    _
  $region29: #{tpu_custom_call.1} parent=0 // pred_fallthru
    _
  // Predicated region
  $region30: #{tpu_custom_call.1} parent=0 // pred_check
    _
  $region31: #{tpu_custom_call.1} parent=0 // pred_check_branch
    %1442 = sbr.rel (0) target = $region33
  $region32: #{tpu_custom_call.1} parent=0 // pred_region
    _
  $region33: #{tpu_custom_call.1} parent=0 // pred_fallthru
    _

</llo_original>
